<compile_context>
chip_gen: v7x
topology: tpu7x:2x2x1
jax: 0.10.0
libtpu: 0.0.40
codegen_flags: <defaults>
</compile_context>

<pallas_src>
import random

import jax
import jax.numpy as jnp
from jax.experimental import pallas as pl
from jax.experimental.pallas import tpu as pltpu

IN_CHANNELS = 8    # must be 8 for the reference forward to be shape-valid
OUT_CHANNELS = 8

_PACK = 16         # rows packed per 128-lane row (16 * 8 channels = 128 lanes)
_TR_MAX = 4096     # packed rows per block: 4096 * 128 * 4 B = 2 MiB per block
_MIN_GRID = 4      # aim for >= 4 grid steps when the input is large enough

# Deterministic stand-in for `random.choices([...], k=5)` in __init__.
# (Matches the original module's semantics only up to RNG seeding — the op
#  identities are inherently random in the spec.)
random.seed(0)
_OP_NAMES = ["sin", "cos", "tan", "square", "relu", "tanh", "pow2", "pow3"]
_CHOSEN_OPS = random.choices(_OP_NAMES, k=5)

_OPS = {
    "sin": jnp.sin,
    "cos": jnp.cos,
    "tan": jnp.tan,
    "square": jnp.square,
    "relu": lambda x: jnp.maximum(x, 0.0),
    "tanh": jnp.tanh,
    "pow2": lambda x: x * x,
    "pow3": lambda x: x * x * x,
}


def _round_up(a, b):
    return ((a + b - 1) // b) * b


def _cdiv(a, b):
    return -(-a // b)


def _dummy_kernel(x_ref, w_ref, b_ref, o_ref):
    """x_ref: (TR, 128) packed rows; w_ref: (128, 128) block-diag folded weight;
    b_ref: (1, 128) tiled folded bias; o_ref: (TR, 128)."""
    x = x_ref[...]

    # Elementwise prelude (VPU / EUP) on full lane-dense (TR, 128) tiles.
    for name in _CHOSEN_OPS:
        x = _OPS[name](x)

    # Single folded affine map (MXU, K=128) + bias.
    h = jnp.dot(x, w_ref[...], preferred_element_type=jnp.float32) + b_ref[...]

    # sigmoid(h) == 0.5 * tanh(0.5 * h) + 0.5  (exact; one EUP op, no divide)
    o_ref[...] = 0.5 * jnp.tanh(0.5 * h) + 0.5


def init_params(key, in_channels=IN_CHANNELS, out_channels=OUT_CHANNELS):
    ks = jax.random.split(key, 10)
    return {
        "w1": jax.random.normal(ks[0], (in_channels, 16), jnp.float32),
        "b1": jax.random.normal(ks[1], (1, 16), jnp.float32),
        "w2": jax.random.normal(ks[2], (16, 32), jnp.float32),
        "b2": jax.random.normal(ks[3], (1, 32), jnp.float32),
        "w3": jax.random.normal(ks[4], (32, 64), jnp.float32),
        "b3": jax.random.normal(ks[5], (1, 64), jnp.float32),
        "w4": jax.random.normal(ks[6], (64, 8), jnp.float32),
        "b4": jax.random.normal(ks[7], (1, 8), jnp.float32),
        "w5": jax.random.normal(ks[8], (in_channels, out_channels), jnp.float32),
        "b5": jax.random.normal(ks[9], (1, out_channels), jnp.float32),
    }


def _mm(a, b):
    # Full-f32 precision for the one-time parameter fold.
    return jnp.dot(a, b, precision=jax.lax.Precision.HIGHEST)


def _fold_affine(params):
    """Collapse the 5-matmul chain into a single affine map (done once, in XLA)."""
    w_eff = _mm(_mm(_mm(_mm(params["w1"], params["w2"]), params["w3"]),
                    params["w4"]), params["w5"])                 # (in_c, out_c)
    b = _mm(params["b1"], params["w2"]) + params["b2"]
    b = _mm(b, params["w3"]) + params["b3"]
    b = _mm(b, params["w4"]) + params["b4"]
    b = _mm(b, params["w5"]) + params["b5"]                      # (1, out_c)
    return w_eff, b


def _choose_tr(r):
    """Pick packed-rows-per-block. `r` is a multiple of 8."""
    if r <= 2 * 8:          # tiny input: one block
        return r
    tr = _round_up(_cdiv(r, _MIN_GRID), 8)   # >= _MIN_GRID steps when possible
    return max(8, min(_TR_MAX, tr))          # cap block at 2 MiB (v5e VMEM safe)


def dummy_model_forward(x, params):
    """x: (..., in_channels) float32 -> (..., out_channels) float32."""
    orig_shape = x.shape
    in_c = orig_shape[-1]
    out_c = params["w5"].shape[1]
    assert in_c == IN_CHANNELS, "DummyModel forward is only shape-valid for in_channels == 8"

    w_eff, b_eff = _fold_affine(params)                       # (8, out_c), (1, out_c)

    # Block-diagonal expansion: applies w_eff independently to each of the 16
    # packed rows inside one 128-lane row.  Built once; tiny (128 x 16*out_c).
    w_big = jnp.kron(jnp.eye(_PACK, dtype=jnp.float32), w_eff)     # (128, 16*out_c)
    b_big = jnp.tile(b_eff.reshape(1, out_c), (1, _PACK))          # (1, 16*out_c)

    x2d = x.reshape(-1, in_c).astype(jnp.float32)
    m = x2d.shape[0]

    # Pad rows only to a multiple of 128 (<= 127 rows of waste).  Zero pad is
    # safe: every prelude op is finite at 0 and padded rows are sliced off.
    m_pad = _round_up(m, _PACK * 8)
    if m_pad != m:
        x2d = jnp.pad(x2d, ((0, m_pad - m), (0, 0)))

    r = m_pad // _PACK                     # packed rows (multiple of 8)
    lanes_in = _PACK * in_c                # 128
    lanes_out = _PACK * out_c
    x_r = x2d.reshape(r, lanes_in)         # free row-major reshape, no relayout

    tr = _choose_tr(r)
    grid = (_cdiv(r, tr),)                 # trailing block may be partial

    out_r = pl.pallas_call(
        _dummy_kernel,
        out_shape=jax.ShapeDtypeStruct((r, lanes_out), jnp.float32),
        grid=grid,
        in_specs=[
            pl.BlockSpec((tr, lanes_in), lambda i: (i, 0)),          # x tile, pipelined
            pl.BlockSpec((lanes_in, lanes_out), lambda i: (0, 0)),   # W_big, resident
            pl.BlockSpec((1, lanes_out), lambda i: (0, 0)),          # bias, resident
        ],
        out_specs=pl.BlockSpec((tr, lanes_out), lambda i: (i, 0)),
        compiler_params=pltpu.CompilerParams(
            dimension_semantics=("parallel",)),                      # shards across TCs (v7x)
    )(x_r, w_big, b_big)

    out2d = out_r.reshape(m_pad, out_c)[:m]    # free reshape + slice
    return out2d.reshape(orig_shape[:-1] + (out_c,))


def _reference_unfolded(x, params):
    """Pure-JAX reference of the original (unfolded) forward."""
    h = x.astype(jnp.float32)
    for name in _CHOSEN_OPS:
        h = _OPS[name](h)
    h = h @ params["w1"] + params["b1"]
    h = h @ params["w2"] + params["b2"]
    h = h @ params["w3"] + params["b3"]
    h = h @ params["w4"] + params["b4"]
    h = h @ params["w5"] + params["b5"]
    return jax.nn.sigmoid(h)


def _reference_folded(x, params):
    """Pure-JAX reference using the same folded affine as the kernel."""
    w_eff, b_eff = _fold_affine(params)
    h = x.astype(jnp.float32)
    for name in _CHOSEN_OPS:
        h = _OPS[name](h)
    return jax.nn.sigmoid(h @ w_eff + b_eff)


if __name__ == "__main__":
    key = jax.random.PRNGKey(0)
    k_param, k_x = jax.random.split(key)

    params = init_params(k_param)
    # batch=2, seq=16, channels=8 (last dim must equal in_channels=8)
    x = jax.random.normal(k_x, (2, 16, IN_CHANNELS), jnp.float32)

    out = jax.block_until_ready(dummy_model_forward(x, params))
    assert out.shape == (2, 16, OUT_CHANNELS), out.shape

    # Kernel vs. a reference using the identical folded affine (validates the
    # kernel / layout plumbing itself).
    ref_f = _reference_folded(x, params)
    assert jnp.allclose(out, ref_f, atol=5e-4, rtol=5e-4), "mismatch vs folded ref"

    # Semantic check vs. the original unfolded chain (fold only changes f32
    # rounding order, so a looser tolerance is used).
    ref_u = _reference_unfolded(x, params)
    assert jnp.allclose(out, ref_u, atol=2e-3, rtol=2e-3), "mismatch vs unfolded ref"

    print("KERNEL_OK")
</pallas_src>

<mosaic_0001>
module attributes {stable_mosaic.version = 11 : i64} {
  func.func @_dummy_kernel(%arg0: i32, %arg1: memref<8x128xf32, #tpu.memory_space<vmem>>, %arg2: memref<128x128xf32, #tpu.memory_space<vmem>>, %arg3: memref<1x128xf32, #tpu.memory_space<vmem>>, %arg4: memref<8x128xf32, #tpu.memory_space<vmem>>) attributes {dimension_semantics = [#tpu.dimension_semantics<parallel>], iteration_bounds = array<i64: 1>, scalar_prefetch = 0 : i64, scratch_operands = 0 : i64, tpu.core_type = #tpu.core_type<tc>, window_params = [{transform_indices = @transform_0, window_bounds = array<i64: 8, 128>}, {pipeline_mode = #tpu.pipeline_mode<synchronous>, transform_indices = @transform_1, window_bounds = array<i64: 128, 128>}, {pipeline_mode = #tpu.pipeline_mode<synchronous>, transform_indices = @transform_2, window_bounds = array<i64: 1, 128>}, {transform_indices = @transform_3, window_bounds = array<i64: 8, 128>}]} {
    %c0 = arith.constant 0 : index
    %c0_0 = arith.constant 0 : index
    %0 = vector.load %arg1[%c0, %c0_0] : memref<8x128xf32, #tpu.memory_space<vmem>>, vector<8x128xf32>
    %1 = arith.mulf %0, %0 : vector<8x128xf32>
    %2 = arith.mulf %1, %1 : vector<8x128xf32>
    %3 = arith.mulf %2, %2 : vector<8x128xf32>
    %4 = math.tan %3 : vector<8x128xf32>
    %cst = arith.constant 0.000000e+00 : f32
    %5 = vector.broadcast %cst : f32 to vector<8x128xf32>
    %6 = arith.maximumf %4, %5 : vector<8x128xf32>
    %c0_1 = arith.constant 0 : index
    %c0_2 = arith.constant 0 : index
    %7 = vector.load %arg2[%c0_1, %c0_2] : memref<128x128xf32, #tpu.memory_space<vmem>>, vector<128x128xf32>
    %cst_3 = arith.constant dense<0.000000e+00> : vector<8x128xf32>
    %8 = tpu.matmul %6, %7, %cst_3 {dimension_numbers = #tpu.dot_dimension_numbers<[1], [0], [0], [1], [0, 0, 1, 1], [], []>} : vector<8x128xf32>, vector<128x128xf32>, vector<8x128xf32> -> vector<8x128xf32>
    %c0_4 = arith.constant 0 : index
    %c0_5 = arith.constant 0 : index
    %9 = vector.load %arg3[%c0_4, %c0_5] : memref<1x128xf32, #tpu.memory_space<vmem>>, vector<1x128xf32>
    %10 = vector.broadcast %9 : vector<1x128xf32> to vector<8x128xf32>
    %11 = arith.addf %8, %10 : vector<8x128xf32>
    %cst_6 = arith.constant 5.000000e-01 : f32
    %12 = vector.broadcast %cst_6 : f32 to vector<8x128xf32>
    %13 = arith.mulf %12, %11 : vector<8x128xf32>
    %14 = math.tanh %13 : vector<8x128xf32>
    %cst_7 = arith.constant 5.000000e-01 : f32
    %15 = vector.broadcast %cst_7 : f32 to vector<8x128xf32>
    %16 = arith.mulf %15, %14 : vector<8x128xf32>
    %cst_8 = arith.constant 5.000000e-01 : f32
    %17 = vector.broadcast %cst_8 : f32 to vector<8x128xf32>
    %18 = arith.addf %16, %17 : vector<8x128xf32>
    %c0_9 = arith.constant 0 : index
    %c0_10 = arith.constant 0 : index
    %19 = vector.load %arg4[%c0_9, %c0_10] : memref<8x128xf32, #tpu.memory_space<vmem>>, vector<8x128xf32>
    tpu.vector_store %arg4[%c0_9, %c0_10], %18 {strides = array<i32>} : memref<8x128xf32, #tpu.memory_space<vmem>>, vector<8x128xf32>,
    return
  }
  func.func @transform_0(%arg0: i32) -> (i32, i32) {
    %c0_i32 = arith.constant 0 : i32
    %c0_i32_0 = arith.constant 0 : i32
    return %arg0, %c0_i32 : i32, i32
  }
  func.func @transform_1(%arg0: i32) -> (i32, i32) {
    %c0_i32 = arith.constant 0 : i32
    %c0_i32_0 = arith.constant 0 : i32
    %c0_i32_1 = arith.constant 0 : i32
    return %c0_i32, %c0_i32_0 : i32, i32
  }
  func.func @transform_2(%arg0: i32) -> (i32, i32) {
    %c0_i32 = arith.constant 0 : i32
    %c0_i32_0 = arith.constant 0 : i32
    %c0_i32_1 = arith.constant 0 : i32
    return %c0_i32, %c0_i32_0 : i32, i32
  }
  func.func @transform_3(%arg0: i32) -> (i32, i32) {
    %c0_i32 = arith.constant 0 : i32
    %c0_i32_0 = arith.constant 0 : i32
    return %arg0, %c0_i32 : i32, i32
  }
}

</mosaic_0001>

<llo_original>
// kernel: tpu_custom_call.1
$region0: #{tpu_custom_call.1}
  #allocation0 [shape = 'u32[]', space=smem, size = 0x4, offset = 0x4, fixed_abs, tag = 'smem constant byte address 0x4 - core index']
  #allocation1 [shape = 'u32[144,128]{1,0:T(1,128)}', space=vmem, size = 0x12000, scoped, tag = 'internal scratch']
  %s0 = inlined_call_operand.hbm [shape: f32[8,128], index: 0, kind: input, shape index: {}]
  %s1 = inlined_call_operand.hbm [shape: f32[128,128], index: 1, kind: input, shape index: {}]
  %s2 = inlined_call_operand.vmem [shape: f32[1,128], index: 2, kind: input, shape index: {}]
  %s3 = inlined_call_operand.hbm [shape: f32[8,128], index: 3, kind: output, shape index: {}]
  %s4 = sld [smem:[#allocation0]]
  $region30: #{tpu_custom_call.1} parent=0
    _
  %s6 = ssub.s32 1, %s4
  %s7 = scalar_select 0, %s6, %s4
  $region1: #{tpu_custom_call.1} parent=0
    #allocation2 [shape = 'u8[4096]{0}', space=vmem, size = 0x1000, scoped, tag = 'input window, operand 0, single buffered']
    #allocation3 [shape = 's32[1]{0}', space=sflag, size = 0x4, scoped, tag = 'scoped memory for tpu_custom_call.1']
    #allocation4 [shape = 's32[1]{0}', space=sflag, size = 0x4, scoped, tag = 'scoped memory for tpu_custom_call.1']
    #allocation5 [shape = 'u8[65536]{0}', space=vmem, size = 0x10000, scoped, tag = 'input window, operand 1, single buffered']
    #allocation6 [shape = 's32[1]{0}', space=sflag, size = 0x4, scoped, tag = 'scoped memory for tpu_custom_call.1']
    #allocation7 [shape = 'u8[4096]{0}', space=vmem, size = 0x1000, scoped, tag = 'output window, operand 0, single buffered']
    %8 = vsyncpa [#allocation3], 0
    %9 = vsyncpa [#allocation6], 0
    %10 = vsyncpa [#allocation4], 0
    // Predicated region
    $region2: #{tpu_custom_call.1} parent=1 // pred_check
      _
    $region3: #{tpu_custom_call.1} parent=1 // pred_check_branch
      %12 = sbr.rel (0) target = $region5
    $region4: #{tpu_custom_call.1} parent=1 // pred_region
      %s14 = ssub.s32 128, 128
      %15 = vsyncadd [#allocation3], %s14
      %s17 = sshll.u32 [#allocation2], 4
      %s18 = int_to_ptr.vmem [resolvable:$true] %s17
      %20 = dma.hbm_to_vmem [thread:$0]  %s0, 128, %s18, [#allocation3]
    $region5: #{tpu_custom_call.1} parent=1 // pred_fallthru
      _
    // Predicated region
    $region6: #{tpu_custom_call.1} parent=1 // pred_check
      _
    $region7: #{tpu_custom_call.1} parent=1 // pred_check_branch
      %22 = sbr.rel (0) target = $region9
    $region8: #{tpu_custom_call.1} parent=1 // pred_region
      %s24 = ssub.s32 2048, 2048
      %25 = vsyncadd [#allocation6], %s24
      %s26 = sshll.u32 [#allocation5], 4
      %s27 = int_to_ptr.vmem [resolvable:$true] %s26
      %32 = dma.hbm_to_vmem [thread:$0]  %s1, 2048, %s27, [#allocation6], 128, 128, 8
    $region9: #{tpu_custom_call.1} parent=1 // pred_fallthru
      _
    // Predicated region
    $region10: #{tpu_custom_call.1} parent=1 // pred_check
      _
    $region11: #{tpu_custom_call.1} parent=1 // pred_check_branch
      %34 = sbr.rel (0) target = $region13
    $region12: #{tpu_custom_call.1} parent=1 // pred_region
      _
    $region13: #{tpu_custom_call.1} parent=1 // pred_fallthru
      _
    // Predicated region
    $region14: #{tpu_custom_call.1} parent=1 // pred_check
      _
    $region15: #{tpu_custom_call.1} parent=1 // pred_check_branch
      %36 = sbr.rel (0) target = $region17
    $region16: #{tpu_custom_call.1} parent=1 // pred_region
      %37 = dma.done [#allocation3], 128
    $region17: #{tpu_custom_call.1} parent=1 // pred_fallthru
      _
    // Predicated region
    $region18: #{tpu_custom_call.1} parent=1 // pred_check
      _
    $region19: #{tpu_custom_call.1} parent=1 // pred_check_branch
      %39 = sbr.rel (0) target = $region21
    $region20: #{tpu_custom_call.1} parent=1 // pred_region
      %40 = dma.done [#allocation6], 2048
    $region21: #{tpu_custom_call.1} parent=1 // pred_fallthru
      _
    %v41 = vld [vmem:[#allocation2] sm:$0xff]
    %v42 = vmul.f32 %v41, %v41
    %v43 = vmul.f32 %v42, %v42
    %v44 = vmul.f32 %v43, %v43
    %v45 = vand.u32 2147483647, %v44
    %vm46 = vcmp.le.f32.partialorder %v45, 0.7853982
    %vm47 = vcmp.lt.s32.totalorder %v44, 0
    %v48 = vand.u32 %v44, 2139095040
    %v49 = vshrl.u32 %v48, 23
    %v50 = vsub.s32 %v49, 127
    %v51 = vand.u32 2147483647, %v44
    %v52 = vand.u32 %v51, 8388607
    %v53 = vor.u32 %v52, 8388608
    %v54 = vsub.s32 0, %v53
    %v55 = vadd.s32 %v50, 1
    %vm56 = vcmp.gt.s32.totalorder %v55, 0
    %v57 = vsel %vm56, %v55, 0
    %v58 = vshrl.u32 %v57, 5
    %v59 = vand.u32 %v57, 31
    %v60 = vsub.s32 32, %v59
    %v61 = vshrl.u32 683565275, %v60
    %v62 = vshll.u32 683565275, %v59
    %v63 = vshrl.u32 2475754826, %v60
    %v64 = vor.u32 %v62, %v63
    %v65 = vshll.u32 2475754826, %v59
    %v66 = vshrl.u32 2131351028, %v60
    %v67 = vor.u32 %v65, %v66
    %v68 = vshll.u32 2131351028, %v59
    %v69 = vshrl.u32 2102212464, %v60
    %v70 = vor.u32 %v68, %v69
    %v71 = vshll.u32 2102212464, %v59
    %v72 = vshrl.u32 920167782, %v60
    %v73 = vor.u32 %v71, %v72
    %v74 = vshll.u32 920167782, %v59
    %v75 = vshrl.u32 1326507024, %v60
    %v76 = vor.u32 %v74, %v75
    %vm77 = vcmp.lt.s32.totalorder %v58, 1
    %vm78 = vcmp.lt.s32.totalorder %v58, 2
    %vm79 = vcmp.lt.s32.totalorder %v58, 3
    %vm80 = vcmp.lt.s32.totalorder %v58, 4
    %v81 = vsel %vm77, %v61, %v64
    %v82 = vsel %vm80, %v70, 2102212464
    %v83 = vsel %vm79, %v67, %v82
    %v84 = vsel %vm78, %v81, %v83
    %v85 = vsel %vm77, %v64, %v67
    %v86 = vsel %vm80, %v73, 920167782
    %v87 = vsel %vm79, %v70, %v86
    %v88 = vsel %vm78, %v85, %v87
    %v89 = vsel %vm77, %v67, %v70
    %v90 = vsel %vm80, %v76, 1326507024
    %v91 = vsel %vm79, %v73, %v90
    %v92 = vsel %vm78, %v89, %v91
    %v93 = vshll.u32 %v53, 8
    %v94 = vmul.u32.u64.compose %v93, %v92
    %v95 = vextract.low.u32 %v94
    %v96 = vextract.high.u32 %v94
    %v97 = vmul.u32.u64.compose %v93, %v88
    %v98 = vextract.low.u32 %v97
    %v99 = vextract.high.u32 %v97
    %v100 = vmul.u32 %v93, %v84
    %v101 = vadd.s32 %v96, %v98
    %vm102 = vc.u32 %v96, %v98
    %v103 = vadd.s32 %v99, 1
    %v104 = vsel %vm102, %v103, %v99
    %v105 = vadd.s32 %v100, %v104
    %v106 = vadd.s32 %v105, 536870912
    %v107 = vshrl.u32 %v106, 30
    %v108 = vshll.u32 %v107, 30
    %v109 = vsub.s32 %v105, %v108
    %vm110 = vcmp.lt.s32.totalorder %v109, 0
    %v111 = vsub.s32 0, %v109
    %v112 = vsel %vm110, %v111, %v109
    %v113 = vclz %v112
    %v114 = vsub.s32 %v113, 2
    %vm115 = vcmp.gt.s32.totalorder 0, %v114
    %v116 = vsel %vm115, 0, %v114
    %v117 = vsub.s32 32, %v116
    %v118 = vshll.u32 %v109, %v116
    %v119 = vshrl.u32 %v101, %v117
    %v120 = vor.u32 %v118, %v119
    %v121 = vsub.s32 4294967266, %v116
    %v122 = vadd.s32 %v121, 127
    %v123 = vshll.u32 %v122, 23
    %v124 = vor.u32 4788187, %v123
    %v125 = vand.u32 2147483647, %v124
    %v127 = vcvt.s32.f32 %v120
    %v128 = vmul.f32 %v127, %v125
    %v129 = vxor.u32 %v128, 2147483648
    %v130 = vsel %vm47, %v129, %v128
    %v131 = vsub.s32 4, %v107
    %v132 = vsel %vm47, %v131, %v107
    %v133 = vsel %vm46, %v44, %v130
    %v134 = vsel %vm46, 0, %v132
    %v135 = vcosq.f32.pop %v133
    %v136 = vsinq.f32.pop %v133
    %vm137 = vweird.f32 %v44
    %v138 = vand.u32 %v134, 3
    %v139 = vadd.s32 %v134, 3
    %v140 = vand.u32 %v139, 3
    %vm141 = vcmp.lt.s32.totalorder %v138, 2
    %vm142 = vcmp.eq.s32.totalorder %v138, 0
    %v143 = vxor.u32 %v136, 2147483648
    %v144 = vsel %vm142, %v135, %v143
    %vm145 = vcmp.eq.s32.totalorder %v138, 2
    %v146 = vxor.u32 %v135, 2147483648
    %v147 = vsel %vm145, %v146, %v136
    %v148 = vsel %vm141, %v144, %v147
    %vm149 = vcmp.lt.s32.totalorder %v140, 2
    %vm150 = vcmp.eq.s32.totalorder %v140, 0
    %v151 = vxor.u32 %v136, 2147483648
    %v152 = vsel %vm150, %v135, %v151
    %vm153 = vcmp.eq.s32.totalorder %v140, 2
    %v154 = vxor.u32 %v135, 2147483648
    %v155 = vsel %vm153, %v154, %v136
    %v156 = vsel %vm149, %v152, %v155
    %v157 = vrcp.pop %v148
    %v158 = vmul.f32 %v156, %v157
    %v159 = vsel %vm137, nan, %v158
    %v160 = vmax.f32 %v159, 0.0
    %v161 = vld [vmem:[#allocation5] sm:$0xff]
    %v162 = vld [vmem:[#allocation5 + $0x8] sm:$0xff]
    %v163 = vld [vmem:[#allocation5 + $0x10] sm:$0xff]
    %v164 = vld [vmem:[#allocation5 + $0x18] sm:$0xff]
    %v165 = vld [vmem:[#allocation5 + $0x20] sm:$0xff]
    %v166 = vld [vmem:[#allocation5 + $0x28] sm:$0xff]
    %v167 = vld [vmem:[#allocation5 + $0x30] sm:$0xff]
    %v168 = vld [vmem:[#allocation5 + $0x38] sm:$0xff]
    %v169 = vld [vmem:[#allocation5 + $0x40] sm:$0xff]
    %v170 = vld [vmem:[#allocation5 + $0x48] sm:$0xff]
    %v171 = vld [vmem:[#allocation5 + $0x50] sm:$0xff]
    %v172 = vld [vmem:[#allocation5 + $0x58] sm:$0xff]
    %v173 = vld [vmem:[#allocation5 + $0x60] sm:$0xff]
    %v174 = vld [vmem:[#allocation5 + $0x68] sm:$0xff]
    %v175 = vld [vmem:[#allocation5 + $0x70] sm:$0xff]
    %v176 = vld [vmem:[#allocation5 + $0x78] sm:$0xff]
    %v177 = vld [vmem:[%s2] sm:$0x1]
    %v179 = vlaneseq
    %v180 = vshrl.u32 %v179, 7
    %v181 = vsub.s32 0, %v180
    %v182 = vrot.slane %v177, %v181
    %184 = vmatprep.subr.mxu0 0.0
    %185 = vmatpush1.msra.mxu0 %v161
    %186 = vmatprep.subr.mxu0 0.0
    %187 = vmatpush1.msra.mxu0 %v162
    %188 = vmatprep.subr.mxu0 0.0
    %189 = vmatpush1.msra.mxu0 %v163
    %190 = vmatprep.subr.mxu0 0.0
    %191 = vmatpush1.msra.mxu0 %v164
    %192 = vmatprep.subr.mxu0 0.0
    %193 = vmatpush1.msra.mxu0 %v165
    %194 = vmatprep.subr.mxu0 0.0
    %195 = vmatpush1.msra.mxu0 %v166
    %196 = vmatprep.subr.mxu0 0.0
    %197 = vmatpush1.msra.mxu0 %v167
    %198 = vmatprep.subr.mxu0 0.0
    %199 = vmatpush1.msra.mxu0 %v168
    %200 = vmatprep.subr.mxu0 0.0
    %201 = vmatpush1.msra.mxu0 %v169
    %202 = vmatprep.subr.mxu0 0.0
    %203 = vmatpush1.msra.mxu0 %v170
    %204 = vmatprep.subr.mxu0 0.0
    %205 = vmatpush1.msra.mxu0 %v171
    %206 = vmatprep.subr.mxu0 0.0
    %207 = vmatpush1.msra.mxu0 %v172
    %208 = vmatprep.subr.mxu0 0.0
    %209 = vmatpush1.msra.mxu0 %v173
    %210 = vmatprep.subr.mxu0 0.0
    %211 = vmatpush1.msra.mxu0 %v174
    %212 = vmatprep.subr.mxu0 0.0
    %213 = vmatpush1.msra.mxu0 %v175
    %214 = vmatprep.subr.mxu0 0.0
    %215 = vmatpush1.msra.mxu0 %v176
    %216 = vmatprep.subr.mxu0 0.0
    %217 = vmatpush1.msra.mxu0 0.0
    %218 = vmatprep.subr.mxu0 0.0
    %219 = vmatpush1.msra.mxu0 0.0
    %220 = vmatprep.subr.mxu0 0.0
    %221 = vmatpush1.msra.mxu0 0.0
    %222 = vmatprep.subr.mxu0 0.0
    %223 = vmatpush1.msra.mxu0 0.0
    %224 = vmatprep.subr.mxu0 0.0
    %225 = vmatpush1.msra.mxu0 0.0
    %226 = vmatprep.subr.mxu0 0.0
    %227 = vmatpush1.msra.mxu0 0.0
    %228 = vmatprep.subr.mxu0 0.0
    %229 = vmatpush1.msra.mxu0 0.0
    %230 = vmatprep.subr.mxu0 0.0
    %231 = vmatpush1.msra.mxu0 0.0
    %232 = vmatprep.subr.mxu0 0.0
    %233 = vmatpush1.msra.mxu0 0.0
    %234 = vmatprep.subr.mxu0 0.0
    %235 = vmatpush1.msra.mxu0 0.0
    %236 = vmatprep.subr.mxu0 0.0
    %237 = vmatpush1.msra.mxu0 0.0
    %238 = vmatprep.subr.mxu0 0.0
    %239 = vmatpush1.msra.mxu0 0.0
    %240 = vmatprep.subr.mxu0 0.0
    %241 = vmatpush1.msra.mxu0 0.0
    %242 = vmatprep.subr.mxu0 0.0
    %243 = vmatpush1.msra.mxu0 0.0
    %244 = vmatprep.subr.mxu0 0.0
    %245 = vmatpush1.msra.mxu0 0.0
    %246 = vmatprep.subr.mxu0 0.0
    %247 = vmatpush1.msra.mxu0 0.0
    %248 = vmatprep.mubr.f32.mxu0 0.0
    %249 = vmatmul.mubr.f32.gmra.mrb[0].mxu0 %v160
    %v250 = vpop.f32.mrb[0].mxu0
    %v251 = vadd.f32 %v182, %v250
    %v252 = vpop.f32.mrb[0].mxu0
    %253 = vdwg.mxu0
    %v254 = vmul.f32 %v251, 0.5
    %v255 = vtanh.pop %v254
    %v256 = vmul.f32 %v255, 0.5
    %v257 = vadd.f32 %v256, 0.5
    %258 = vst [vmem:[#allocation7] sm:$0xff] %v257
    // Predicated region
    $region22: #{tpu_custom_call.1} parent=1 // pred_check
      _
    $region23: #{tpu_custom_call.1} parent=1 // pred_check_branch
      %260 = sbr.rel (0) target = $region25
    $region24: #{tpu_custom_call.1} parent=1 // pred_region
      %s262 = ssub.s32 128, 128
      %263 = vsyncadd [#allocation4], %s262
      %s265 = sshll.u32 [#allocation7], 4
      %s266 = int_to_ptr.vmem [resolvable:$true] %s265
      %268 = dma.vmem_to_hbm [thread:$0]  %s266, 128, %s3, [#allocation4]
    $region25: #{tpu_custom_call.1} parent=1 // pred_fallthru
      _
    // Predicated region
    $region26: #{tpu_custom_call.1} parent=1 // pred_check
      _
    $region27: #{tpu_custom_call.1} parent=1 // pred_check_branch
      %270 = sbr.rel (0) target = $region29
    $region28: #{tpu_custom_call.1} parent=1 // pred_region
      %271 = dma.done [#allocation4], 128
    $region29: #{tpu_custom_call.1} parent=1 // pred_fallthru
      _
    %272 = vsyncpa [#allocation3], 1
    %273 = vsyncpa [#allocation6], 1
    %274 = vsyncpa [#allocation4], 1

</llo_original>
